<compile_context>
chip_gen: v6e
topology: v6e:2x2x1
jax: 0.10.0
libtpu: 0.0.40
codegen_flags: <defaults>
</compile_context>

<pallas_src>
import math

import jax
import jax.numpy as jnp
from jax.experimental import pallas as pl
from jax.experimental.pallas import tpu as pltpu

_LANES = 128
_NUM_CORES = 2       # leading "parallel" grid axis (used by v7x megacore)
_CHUNK_ROWS = 512    # per-chunk fold granularity (bounds in-flight vregs)


def _cdiv(a, b):
    return -(-a // b)


def _sublane_granule(dtype):
    # f32 -> 8 rows, bf16/f16 -> 16, int8/fp8 -> 32 (packed sublane tiles).
    return max(8, 32 // jnp.dtype(dtype).itemsize)


def _make_kernel(tile, chunk, per_core, nsteps, limit, tail_ragged):
    n_chunks = tile // chunk

    def kernel(pred_ref, y_ref, sel_ref, num_ref, den_ref):
        c = pl.program_id(0)          # core-split index (parallel axis)
        j = pl.program_id(1)          # row-tile index within this core's range

        @pl.when(j == 0)
        def _():
            num_ref[...] = jnp.zeros_like(num_ref)
            den_ref[...] = jnp.zeros_like(den_ref)

        b = c * per_core + j          # global row-tile index

        def accumulate(mask_tail):
            num_v = jnp.zeros((1, 8, _LANES), jnp.float32)
            den_v = jnp.zeros((1, 8, _LANES), jnp.float32)
            for g in range(n_chunks):                 # static, <= 8 chunks
                rows = pl.ds(g * chunk, chunk)
                pred = pred_ref[rows, :].astype(jnp.float32)
                y = y_ref[rows, :].astype(jnp.float32)
                sel = sel_ref[rows, :].astype(jnp.float32)
                diff = pred - y
                num_c = diff * diff * sel             # |pred - y|^2 * selector
                den_c = sel
                if mask_tail:
                    # Flat-index validity mask for the ragged last row-tile
                    # (int32 indices: fine for arrays < 2**31 elements).
                    row_i = jax.lax.broadcasted_iota(
                        jnp.int32, (chunk, _LANES), 0)
                    lane_i = jax.lax.broadcasted_iota(
                        jnp.int32, (chunk, _LANES), 1)
                    flat = (b * tile + g * chunk + row_i) * _LANES + lane_i
                    valid = flat < limit
                    num_c = jnp.where(valid, num_c, 0.0)
                    den_c = jnp.where(valid, den_c, 0.0)
                # Sublane-fold: (chunk, 128) -> (1, 8, 128) via VPU adds.
                num_v = num_v + num_c.reshape(1, chunk // 8, 8, _LANES).sum(axis=1)
                den_v = den_v + den_c.reshape(1, chunk // 8, 8, _LANES).sum(axis=1)
            num_ref[...] += num_v
            den_ref[...] += den_v

        if tail_ragged:
            @pl.when(b < nsteps - 1)
            def _():
                accumulate(False)

            @pl.when(b == nsteps - 1)
            def _():
                accumulate(True)
        else:
            @pl.when(b < nsteps)
            def _():
                accumulate(False)

    return kernel


def _to_lane_dense(x, rows_arr, total):
    flat = x.reshape(-1)
    pad = rows_arr * _LANES - total
    if pad:
        flat = jnp.pad(flat, (0, pad))
    return flat.reshape(rows_arr, _LANES)


def mh_mse_loss(predictions, y, selector, *, tile_rows=4096,
                vmem_limit_bytes=32 << 20):
    """sqrt( sum((pred - y)^2 * selector) / sum(selector) ) as a Pallas kernel.

    Precondition: sum(selector) > 0 (otherwise NaN, matching the PyTorch ref).
    bf16 / f16 / int inputs are accepted as-is (accumulation is in f32).
    """
    assert predictions.shape == y.shape == selector.shape
    total = math.prod(predictions.shape)
    assert total > 0

    gran = max(_sublane_granule(predictions.dtype),
               _sublane_granule(y.dtype),
               _sublane_granule(selector.dtype))

    rows = _cdiv(total, _LANES)
    if total == rows * _LANES and rows >= gran:
        # Zero-copy: flat length is already a multiple of 128 lanes.
        rows_arr = rows
        pred2d = predictions.reshape(rows_arr, _LANES)
        y2d = y.reshape(rows_arr, _LANES)
        sel2d = selector.reshape(rows_arr, _LANES)
    else:
        # Residual pad only to the next lane/sublane boundary (no tile-multiple
        # round-up); padded zeros contribute nothing to either sum.
        rows_arr = max(rows, gran)
        pred2d = _to_lane_dense(predictions, rows_arr, total)
        y2d = _to_lane_dense(y, rows_arr, total)
        sel2d = _to_lane_dense(selector, rows_arr, total)

    # Tile selection: as large as requested, dtype-aware sublane granule,
    # snapped to a multiple of _CHUNK_ROWS when bigger than one chunk.
    max_rows = (rows_arr // gran) * gran
    tile_req = max(gran, (tile_rows // gran) * gran)
    tile = min(tile_req, max_rows)
    if tile > _CHUNK_ROWS:
        tile = (tile // _CHUNK_ROWS) * _CHUNK_ROWS
    chunk = min(tile, _CHUNK_ROWS)

    nsteps = _cdiv(rows_arr, tile)          # real row-tiles
    per_core = _cdiv(nsteps, _NUM_CORES)    # row-tiles per core
    tail_ragged = nsteps * tile > rows_arr  # last tile overhangs the array
    limit = rows_arr * _LANES               # valid flat-index bound

    def in_map(c, j):
        # Clamp so the (at most one) overhang step of the second core re-reads
        # the last real block; its compute is gated off inside the kernel.
        return (jnp.minimum(c * per_core + j, nsteps - 1), 0)

    in_spec = pl.BlockSpec((tile, _LANES), in_map)
    out_spec = pl.BlockSpec((1, 8, _LANES), lambda c, j: (c, 0, 0))
    part_shape = jax.ShapeDtypeStruct((_NUM_CORES, 8, _LANES), jnp.float32)

    bytes_in = (pred2d.size * pred2d.dtype.itemsize
                + y2d.size * y2d.dtype.itemsize
                + sel2d.size * sel2d.dtype.itemsize)

    num_part, den_part = pl.pallas_call(
        _make_kernel(tile, chunk, per_core, nsteps, limit, tail_ragged),
        out_shape=(part_shape, part_shape),
        grid_spec=pltpu.PrefetchScalarGridSpec(
            num_scalar_prefetch=0,
            grid=(_NUM_CORES, per_core),
            in_specs=[in_spec, in_spec, in_spec],
            out_specs=[out_spec, out_spec],
        ),
        compiler_params=pltpu.CompilerParams(
            dimension_semantics=("parallel", "arbitrary"),
            vmem_limit_bytes=vmem_limit_bytes,
        ),
        cost_estimate=pl.CostEstimate(
            flops=5 * total,
            transcendentals=0,
            bytes_accessed=bytes_in + 2 * _NUM_CORES * 8 * _LANES * 4),
    )(pred2d, y2d, sel2d)

    # Tiny combine (2 x 2 x 8 x 128 partials) + divide + sqrt in the wrapper so
    # the v7x per-core partials stay numerically exact.
    num = jnp.sum(num_part)
    den = jnp.sum(den_part)
    return jnp.sqrt(num / den)


def _ref_loss(predictions, y, selector):
    p = predictions.astype(jnp.float32)
    t = y.astype(jnp.float32)
    s = selector.astype(jnp.float32)
    sq = jnp.square(jnp.abs(p - t))
    return jnp.sqrt(jnp.sum(sq * s) / jnp.sum(s))


if __name__ == "__main__":
    # ---- Test 1: small multi-head shape (16 samples, 4 heads), f32 ----------
    key = jax.random.PRNGKey(0)
    k1, k2, k3 = jax.random.split(key, 3)
    N, H = 16, 4
    predictions = jax.random.normal(k1, (N, H), dtype=jnp.float32)
    y = jax.random.normal(k2, (N, H), dtype=jnp.float32)
    head_idx = jax.random.randint(k3, (N,), 0, H)
    selector = jax.nn.one_hot(head_idx, H, dtype=jnp.float32)

    loss = jax.block_until_ready(mh_mse_loss(predictions, y, selector))
    ref = _ref_loss(predictions, y, selector)
    assert jnp.allclose(loss, ref, rtol=1e-5, atol=1e-5), (loss, ref)

    # ---- Test 2: multi-tile, unaligned total, exercises ragged-tail mask and
    #              the clamped overhang step of the second "core" -------------
    kk1, kk2, kk3 = jax.random.split(jax.random.PRNGKey(1), 3)
    N2, H2 = 3000, 7
    p2 = jax.random.normal(kk1, (N2, H2), dtype=jnp.float32)
    y2 = jax.random.normal(kk2, (N2, H2), dtype=jnp.float32)
    s2 = jax.nn.one_hot(jax.random.randint(kk3, (N2,), 0, H2), H2,
                        dtype=jnp.float32)
    loss2 = jax.block_until_ready(mh_mse_loss(p2, y2, s2, tile_rows=64))
    ref2 = _ref_loss(p2, y2, s2)
    assert jnp.allclose(loss2, ref2, rtol=1e-5, atol=1e-5), (loss2, ref2)

    # ---- Test 3: 128-aligned total -> zero-copy reshape path ---------------
    kq1, kq2, kq3 = jax.random.split(jax.random.PRNGKey(2), 3)
    N3, H3 = 64, 16
    p3 = jax.random.normal(kq1, (N3, H3), dtype=jnp.float32)
    y3 = jax.random.normal(kq2, (N3, H3), dtype=jnp.float32)
    s3 = jax.nn.one_hot(jax.random.randint(kq3, (N3,), 0, H3), H3,
                        dtype=jnp.float32)
    loss3 = jax.block_until_ready(mh_mse_loss(p3, y3, s3))
    ref3 = _ref_loss(p3, y3, s3)
    assert jnp.allclose(loss3, ref3, rtol=1e-5, atol=1e-5), (loss3, ref3)

    # ---- Test 4: bf16 inputs (halved HBM traffic, dtype-aware granule) -----
    kb1, kb2, kb3 = jax.random.split(jax.random.PRNGKey(3), 3)
    N4, H4 = 300, 5
    p4 = jax.random.normal(kb1, (N4, H4), dtype=jnp.float32).astype(jnp.bfloat16)
    y4 = jax.random.normal(kb2, (N4, H4), dtype=jnp.float32).astype(jnp.bfloat16)
    s4 = jax.nn.one_hot(jax.random.randint(kb3, (N4,), 0, H4), H4,
                        dtype=jnp.bfloat16)
    loss4 = jax.block_until_ready(mh_mse_loss(p4, y4, s4))
    ref4 = _ref_loss(p4, y4, s4)
    assert jnp.allclose(loss4, ref4, rtol=1e-4, atol=1e-4), (loss4, ref4)

    print("KERNEL_OK")
</pallas_src>

<mosaic_0001>
module attributes {stable_mosaic.version = 11 : i64} {
  func.func @kernel(%arg0: i32, %arg1: i32, %arg2: memref<8x128xf32, #tpu.memory_space<vmem>>, %arg3: memref<8x128xf32, #tpu.memory_space<vmem>>, %arg4: memref<8x128xf32, #tpu.memory_space<vmem>>, %arg5: memref<1x8x128xf32, #tpu.memory_space<vmem>>, %arg6: memref<1x8x128xf32, #tpu.memory_space<vmem>>) attributes {dimension_semantics = [#tpu.dimension_semantics<parallel>, #tpu.dimension_semantics<arbitrary>], iteration_bounds = array<i64: 2, 1>, scalar_prefetch = 0 : i64, scratch_operands = 0 : i64, tpu.core_type = #tpu.core_type<tc>, window_params = [{transform_indices = @transform_0, window_bounds = array<i64: 8, 128>}, {transform_indices = @transform_1, window_bounds = array<i64: 8, 128>}, {transform_indices = @transform_2, window_bounds = array<i64: 8, 128>}, {transform_indices = @transform_3, window_bounds = array<i64: 1, 8, 128>}, {transform_indices = @transform_4, window_bounds = array<i64: 1, 8, 128>}]} {
    %c0_i32 = arith.constant 0 : i32
    %0 = arith.cmpi eq, %arg1, %c0_i32 : i32
    %1 = arith.extui %0 : i1 to i32
    %c0_i32_0 = arith.constant 0 : i32
    %2 = arith.cmpi ne, %1, %c0_i32_0 : i32
    scf.if %2 {
      %cst = arith.constant 0.000000e+00 : f32
      %8 = vector.broadcast %cst : f32 to vector<1x8x128xf32>
      %c0 = arith.constant 0 : index
      %c0_3 = arith.constant 0 : index
      %c0_4 = arith.constant 0 : index
      %9 = vector.load %arg5[%c0, %c0_3, %c0_4] : memref<1x8x128xf32, #tpu.memory_space<vmem>>, vector<1x8x128xf32>
      tpu.vector_store %arg5[%c0, %c0_3, %c0_4], %8 {strides = array<i32>} : memref<1x8x128xf32, #tpu.memory_space<vmem>>, vector<1x8x128xf32>,
      %cst_5 = arith.constant 0.000000e+00 : f32
      %10 = vector.broadcast %cst_5 : f32 to vector<1x8x128xf32>
      %c0_6 = arith.constant 0 : index
      %c0_7 = arith.constant 0 : index
      %c0_8 = arith.constant 0 : index
      %11 = vector.load %arg6[%c0_6, %c0_7, %c0_8] : memref<1x8x128xf32, #tpu.memory_space<vmem>>, vector<1x8x128xf32>
      tpu.vector_store %arg6[%c0_6, %c0_7, %c0_8], %10 {strides = array<i32>} : memref<1x8x128xf32, #tpu.memory_space<vmem>>, vector<1x8x128xf32>,
    } else {
    }
    %c1_i32 = arith.constant 1 : i32
    %3 = arith.muli %arg0, %c1_i32 : i32
    %4 = arith.addi %3, %arg1 : i32
    %c1_i32_1 = arith.constant 1 : i32
    %5 = arith.cmpi slt, %4, %c1_i32_1 : i32
    %6 = arith.extui %5 : i1 to i32
    %c0_i32_2 = arith.constant 0 : i32
    %7 = arith.cmpi ne, %6, %c0_i32_2 : i32
    scf.if %7 {
      %cst = arith.constant 0.000000e+00 : f32
      %8 = vector.broadcast %cst : f32 to vector<1x8x128xf32>
      %cst_3 = arith.constant 0.000000e+00 : f32
      %9 = vector.broadcast %cst_3 : f32 to vector<1x8x128xf32>
      %c0 = arith.constant 0 : index
      %c0_4 = arith.constant 0 : index
      %10 = vector.load %arg2[%c0, %c0_4] : memref<8x128xf32, #tpu.memory_space<vmem>>, vector<8x128xf32>
      %c0_5 = arith.constant 0 : index
      %c0_6 = arith.constant 0 : index
      %11 = vector.load %arg3[%c0_5, %c0_6] : memref<8x128xf32, #tpu.memory_space<vmem>>, vector<8x128xf32>
      %c0_7 = arith.constant 0 : index
      %c0_8 = arith.constant 0 : index
      %12 = vector.load %arg4[%c0_7, %c0_8] : memref<8x128xf32, #tpu.memory_space<vmem>>, vector<8x128xf32>
      %13 = arith.subf %10, %11 : vector<8x128xf32>
      %14 = arith.mulf %13, %13 : vector<8x128xf32>
      %15 = arith.mulf %14, %12 : vector<8x128xf32>
      %16 = vector.shape_cast %15 : vector<8x128xf32> to vector<1x1x8x128xf32>
      %cst_9 = arith.constant dense<0.000000e+00> : vector<1x8x128xf32>
      %17 = vector.multi_reduction <add>, %16, %cst_9 [1] : vector<1x1x8x128xf32> to vector<1x8x128xf32>
      %18 = arith.addf %8, %17 : vector<1x8x128xf32>
      %19 = vector.shape_cast %12 : vector<8x128xf32> to vector<1x1x8x128xf32>
      %cst_10 = arith.constant dense<0.000000e+00> : vector<1x8x128xf32>
      %20 = vector.multi_reduction <add>, %19, %cst_10 [1] : vector<1x1x8x128xf32> to vector<1x8x128xf32>
      %21 = arith.addf %9, %20 : vector<1x8x128xf32>
      %c0_11 = arith.constant 0 : index
      %c0_12 = arith.constant 0 : index
      %c0_13 = arith.constant 0 : index
      %22 = vector.load %arg5[%c0_11, %c0_12, %c0_13] : memref<1x8x128xf32, #tpu.memory_space<vmem>>, vector<1x8x128xf32>
      %23 = arith.addf %22, %18 : vector<1x8x128xf32>
      %c0_14 = arith.constant 0 : index
      %c0_15 = arith.constant 0 : index
      %c0_16 = arith.constant 0 : index
      %24 = vector.load %arg5[%c0_14, %c0_15, %c0_16] : memref<1x8x128xf32, #tpu.memory_space<vmem>>, vector<1x8x128xf32>
      tpu.vector_store %arg5[%c0_14, %c0_15, %c0_16], %23 {strides = array<i32>} : memref<1x8x128xf32, #tpu.memory_space<vmem>>, vector<1x8x128xf32>,
      %c0_17 = arith.constant 0 : index
      %c0_18 = arith.constant 0 : index
      %c0_19 = arith.constant 0 : index
      %25 = vector.load %arg6[%c0_17, %c0_18, %c0_19] : memref<1x8x128xf32, #tpu.memory_space<vmem>>, vector<1x8x128xf32>
      %26 = arith.addf %25, %21 : vector<1x8x128xf32>
      %c0_20 = arith.constant 0 : index
      %c0_21 = arith.constant 0 : index
      %c0_22 = arith.constant 0 : index
      %27 = vector.load %arg6[%c0_20, %c0_21, %c0_22] : memref<1x8x128xf32, #tpu.memory_space<vmem>>, vector<1x8x128xf32>
      tpu.vector_store %arg6[%c0_20, %c0_21, %c0_22], %26 {strides = array<i32>} : memref<1x8x128xf32, #tpu.memory_space<vmem>>, vector<1x8x128xf32>,
    } else {
    }
    return
  }
  func.func @transform_0(%arg0: i32, %arg1: i32) -> (i32, i32) {
    %c1_i32 = arith.constant 1 : i32
    %0 = arith.muli %arg0, %c1_i32 : i32
    %1 = arith.addi %0, %arg1 : i32
    %c0_i32 = arith.constant 0 : i32
    %2 = arith.minsi %1, %c0_i32 : i32
    %c0_i32_0 = arith.constant 0 : i32
    %c0_i32_1 = arith.constant 0 : i32
    return %2, %c0_i32_0 : i32, i32
  }
  func.func @transform_1(%arg0: i32, %arg1: i32) -> (i32, i32) {
    %c1_i32 = arith.constant 1 : i32
    %0 = arith.muli %arg0, %c1_i32 : i32
    %1 = arith.addi %0, %arg1 : i32
    %c0_i32 = arith.constant 0 : i32
    %2 = arith.minsi %1, %c0_i32 : i32
    %c0_i32_0 = arith.constant 0 : i32
    %c0_i32_1 = arith.constant 0 : i32
    return %2, %c0_i32_0 : i32, i32
  }
  func.func @transform_2(%arg0: i32, %arg1: i32) -> (i32, i32) {
    %c1_i32 = arith.constant 1 : i32
    %0 = arith.muli %arg0, %c1_i32 : i32
    %1 = arith.addi %0, %arg1 : i32
    %c0_i32 = arith.constant 0 : i32
    %2 = arith.minsi %1, %c0_i32 : i32
    %c0_i32_0 = arith.constant 0 : i32
    %c0_i32_1 = arith.constant 0 : i32
    return %2, %c0_i32_0 : i32, i32
  }
  func.func @transform_3(%arg0: i32, %arg1: i32) -> (i32, i32, i32) {
    %c0_i32 = arith.constant 0 : i32
    %c0_i32_0 = arith.constant 0 : i32
    %c0_i32_1 = arith.constant 0 : i32
    return %arg0, %c0_i32, %c0_i32_0 : i32, i32, i32
  }
  func.func @transform_4(%arg0: i32, %arg1: i32) -> (i32, i32, i32) {
    %c0_i32 = arith.constant 0 : i32
    %c0_i32_0 = arith.constant 0 : i32
    %c0_i32_1 = arith.constant 0 : i32
    return %arg0, %c0_i32, %c0_i32_0 : i32, i32, i32
  }
}

</mosaic_0001>

<llo_original>
// kernel: tpu_custom_call.1
$region0: #{tpu_custom_call.1}
  #allocation0 [shape = 'u32[]', space=smem, size = 0x4, offset = 0x4, fixed_abs, tag = 'smem constant byte address 0x4 - core index']
  #allocation1 [shape = 'u32[144,128]{1,0:T(1,128)}', space=vmem, size = 0x12000, scoped, tag = 'internal scratch']
  %s0 = inlined_call_operand.hbm [shape: f32[8,128], index: 0, kind: input, shape index: {}]
  %s1 = inlined_call_operand.hbm [shape: f32[8,128], index: 1, kind: input, shape index: {}]
  %s2 = inlined_call_operand.hbm [shape: f32[8,128], index: 2, kind: input, shape index: {}]
  %s3 = inlined_call_operand.hbm [shape: f32[2,8,128], index: 3, kind: output, shape index: {0}]
  %s4 = inlined_call_operand.hbm [shape: f32[2,8,128], index: 4, kind: output, shape index: {1}]
  %5 = xla_tuple %s3, %s4
  %s6 = sld [smem:[#allocation0]]
  $region73: #{tpu_custom_call.1} parent=0
    _
  %s8 = ssub.s32 1, %s6
  %s9 = scalar_select 0, %s8, %s6
  $region1: #{tpu_custom_call.1} parent=0
    #allocation2 [shape = 'u8[8192]{0}', space=vmem, size = 0x2000, scoped, tag = 'input window, operand 0']
    #allocation3 [shape = 's32[2]{0}', space=sflag, size = 0x8, scoped, tag = 'scoped memory for tpu_custom_call.1']
    #allocation4 [shape = 's32[2]{0}', space=sflag, size = 0x8, scoped, tag = 'scoped memory for tpu_custom_call.1']
    #allocation5 [shape = 'u8[8192]{0}', space=vmem, size = 0x2000, scoped, tag = 'input window, operand 1']
    #allocation6 [shape = 's32[2]{0}', space=sflag, size = 0x8, scoped, tag = 'scoped memory for tpu_custom_call.1']
    #allocation7 [shape = 'u8[8192]{0}', space=vmem, size = 0x2000, scoped, tag = 'input window, operand 2']
    #allocation8 [shape = 'u8[8192]{0}', space=vmem, size = 0x2000, scoped, tag = 'output window, operand 0']
    #allocation9 [shape = 'u8[8192]{0}', space=vmem, size = 0x2000, scoped, tag = 'output window, operand 1']
    #allocation10 [shape = 's32[2]{0}', space=sflag, size = 0x8, scoped, tag = 'scoped memory for tpu_custom_call.1']
    %10 = vsyncpa [#allocation3], 0
    %s11 = scalar_lea.sflag [#allocation3], 1
    %12 = vsyncpa %s11, 0
    %13 = vsyncpa [#allocation6], 0
    %s14 = scalar_lea.sflag [#allocation6], 1
    %15 = vsyncpa %s14, 0
    %16 = vsyncpa [#allocation4], 0
    %s17 = scalar_lea.sflag [#allocation4], 1
    %18 = vsyncpa %s17, 0
    %19 = vsyncpa [#allocation10], 0
    %s20 = scalar_lea.sflag [#allocation10], 1
    %21 = vsyncpa %s20, 0
    loop: start=0, step=1, limit=4
    $region2: #{tpu_custom_call.1} parent=1 // loop_pre_header
      _
    $region3: #{tpu_custom_call.1} parent=1 // loop_header
      %s23 = sphi 0, %s27
      %p24 = scmp.ge.s32.totalorder %s23, 4
      %s30 = sphi 0, %s42
      %s31 = sphi 0, %s38
      %s32 = sphi 0, %s30
      %s33 = sphi 0, %s31
      %s34 = sphi 0, %s32
      %s35 = sphi 0, %s33
      %s51 = sphi 0, %s53
      %s54 = sphi 0, %s51
      %s55 = sphi 0, %s54
      %s71 = sphi 0, %s55
      %s83 = sphi 0, %s85
      %s86 = sphi 0, %s83
      %s87 = sphi 0, %s86
      %s103 = sphi 0, %s87
      %s115 = sphi 0, %s117
      %s118 = sphi 0, %s115
      %s119 = sphi 0, %s118
      %s135 = sphi 0, %s119
      %s141 = sphi 0, %s143
      %s144 = sphi 0, %s141
      %s145 = sphi 0, %s144
      %s161 = sphi 0, %s145
      %s167 = sphi 0, %s169
      %s170 = sphi 0, %s167
      %s171 = sphi 0, %s170
      %s187 = sphi 0, %s171
    $region4: #{tpu_custom_call.1} parent=1 // loop_header_branch
      %26 = sbr.rel (%p24) target = $region8
    $region5: #{tpu_custom_call.1} parent=1 // loop_body
      %s28 = ssub.s32 %s23, 1
      %s29 = ssub.s32 %s23, 2
      %s36 = sadd.s32 1, %s31
      %p37 = scmp.ge.s32.totalorder %s36, 1
      %s38 = scalar_select %p37, 0, %s36
      %s39 = sadd.s32 1, %s30
      %s40 = scalar_select %p37, %s39, %s30
      %p41 = scmp.ge.s32.totalorder %s40, 2
      %s42 = scalar_select %p41, 0, %s40
      %s43 = sadd.s32 %s30, %s31
      %p44 = scmp.lt.s32.totalorder %s43, 0
      %s45 = scalar_select %p44, %s43, 0
      %s46 = sadd.s32 %s42, %s38
      %p47 = scmp.lt.s32.totalorder %s46, 0
      %s48 = scalar_select %p47, %s46, 0
      %s49 = ssub.s32 %s45, %s48
      %p50 = scmp.eq.s32.totalorder %s49, 0
      %s52 = sadd.s32 %s51, 1
      %s53 = scalar_select %p50, %s51, %s52
      %p56 = pneg %p50
      %p57 = scmp.eq.s32.totalorder %s23, 1
      %p58 = por %p56, %p57
      %p59 = scmp.ne.s32.totalorder %s51, %s54
      %p60 = scmp.eq.s32.totalorder %s23, 0
      %p61 = por %p59, %p60
      %p62 = scmp.ne.s32.totalorder %s51, %s54
      %p63 = scmp.eq.s32.totalorder %s28, 1
      %p64 = por %p62, %p63
      %p65 = scmp.ne.s32.totalorder %s54, %s55
      %p66 = scmp.eq.s32.totalorder %s28, 0
      %p67 = por %p65, %p66
      %p68 = scmp.ne.s32.totalorder %s54, %s55
      %p69 = scmp.eq.s32.totalorder %s29, 1
      %p70 = por %p68, %p69
      %p72 = scmp.ne.s32.totalorder %s55, %s71
      %p73 = scmp.eq.s32.totalorder %s29, 0
      %p74 = por %p72, %p73
      %s75 = sadd.s32 %s30, %s31
      %p76 = scmp.lt.s32.totalorder %s75, 0
      %s77 = scalar_select %p76, %s75, 0
      %s78 = sadd.s32 %s42, %s38
      %p79 = scmp.lt.s32.totalorder %s78, 0
      %s80 = scalar_select %p79, %s78, 0
      %s81 = ssub.s32 %s77, %s80
      %p82 = scmp.eq.s32.totalorder %s81, 0
      %s84 = sadd.s32 %s83, 1
      %s85 = scalar_select %p82, %s83, %s84
      %p88 = pneg %p82
      %p89 = scmp.eq.s32.totalorder %s23, 1
      %p90 = por %p88, %p89
      %p91 = scmp.ne.s32.totalorder %s83, %s86
      %p92 = scmp.eq.s32.totalorder %s23, 0
      %p93 = por %p91, %p92
      %p94 = scmp.ne.s32.totalorder %s83, %s86
      %p95 = scmp.eq.s32.totalorder %s28, 1
      %p96 = por %p94, %p95
      %p97 = scmp.ne.s32.totalorder %s86, %s87
      %p98 = scmp.eq.s32.totalorder %s28, 0
      %p99 = por %p97, %p98
      %p100 = scmp.ne.s32.totalorder %s86, %s87
      %p101 = scmp.eq.s32.totalorder %s29, 1
      %p102 = por %p100, %p101
      %p104 = scmp.ne.s32.totalorder %s87, %s103
      %p105 = scmp.eq.s32.totalorder %s29, 0
      %p106 = por %p104, %p105
      %s107 = sadd.s32 %s30, %s31
      %p108 = scmp.lt.s32.totalorder %s107, 0
      %s109 = scalar_select %p108, %s107, 0
      %s110 = sadd.s32 %s42, %s38
      %p111 = scmp.lt.s32.totalorder %s110, 0
      %s112 = scalar_select %p111, %s110, 0
      %s113 = ssub.s32 %s109, %s112
      %p114 = scmp.eq.s32.totalorder %s113, 0
      %s116 = sadd.s32 %s115, 1
      %s117 = scalar_select %p114, %s115, %s116
      %p120 = pneg %p114
      %p121 = scmp.eq.s32.totalorder %s23, 1
      %p122 = por %p120, %p121
      %p123 = scmp.ne.s32.totalorder %s115, %s118
      %p124 = scmp.eq.s32.totalorder %s23, 0
      %p125 = por %p123, %p124
      %p126 = scmp.ne.s32.totalorder %s115, %s118
      %p127 = scmp.eq.s32.totalorder %s28, 1
      %p128 = por %p126, %p127
      %p129 = scmp.ne.s32.totalorder %s118, %s119
      %p130 = scmp.eq.s32.totalorder %s28, 0
      %p131 = por %p129, %p130
      %p132 = scmp.ne.s32.totalorder %s118, %s119
      %p133 = scmp.eq.s32.totalorder %s29, 1
      %p134 = por %p132, %p133
      %p136 = scmp.ne.s32.totalorder %s119, %s135
      %p137 = scmp.eq.s32.totalorder %s29, 0
      %p138 = por %p136, %p137
      %s139 = ssub.s32 %s30, %s42
      %p140 = scmp.eq.s32.totalorder %s139, 0
      %s142 = sadd.s32 %s141, 1
      %s143 = scalar_select %p140, %s141, %s142
      %p146 = pneg %p140
      %p147 = scmp.eq.s32.totalorder %s23, 1
      %p148 = por %p146, %p147
      %p149 = scmp.ne.s32.totalorder %s141, %s144
      %p150 = scmp.eq.s32.totalorder %s23, 0
      %p151 = por %p149, %p150
      %p152 = scmp.ne.s32.totalorder %s141, %s144
      %p153 = scmp.eq.s32.totalorder %s28, 1
      %p154 = por %p152, %p153
      %p155 = scmp.ne.s32.totalorder %s144, %s145
      %p156 = scmp.eq.s32.totalorder %s28, 0
      %p157 = por %p155, %p156
      %p158 = scmp.ne.s32.totalorder %s144, %s145
      %p159 = scmp.eq.s32.totalorder %s29, 1
      %p160 = por %p158, %p159
      %p162 = scmp.ne.s32.totalorder %s145, %s161
      %p163 = scmp.eq.s32.totalorder %s29, 0
      %p164 = por %p162, %p163
      %s165 = ssub.s32 %s30, %s42
      %p166 = scmp.eq.s32.totalorder %s165, 0
      %s168 = sadd.s32 %s167, 1
      %s169 = scalar_select %p166, %s167, %s168
      %p172 = pneg %p166
      %p173 = scmp.eq.s32.totalorder %s23, 1
      %p174 = por %p172, %p173
      %p175 = scmp.ne.s32.totalorder %s167, %s170
      %p176 = scmp.eq.s32.totalorder %s23, 0
      %p177 = por %p175, %p176
      %p178 = scmp.ne.s32.totalorder %s167, %s170
      %p179 = scmp.eq.s32.totalorder %s28, 1
      %p180 = por %p178, %p179
      %p181 = scmp.ne.s32.totalorder %s170, %s171
      %p182 = scmp.eq.s32.totalorder %s28, 0
      %p183 = por %p181, %p182
      %p184 = scmp.ne.s32.totalorder %s170, %s171
      %p185 = scmp.eq.s32.totalorder %s29, 1
      %p186 = por %p184, %p185
      %p188 = scmp.ne.s32.totalorder %s171, %s187
      %p189 = scmp.eq.s32.totalorder %s29, 0
      %p190 = por %p188, %p189
      %p191 = scmp.le.s32.totalorder 1, %s23
      %p192 = scmp.lt.s32.totalorder %s23, 3
      %p193 = pnand %p191, %p192
      %p194 = pneg %p193
      // Predicated region
      $region9: #{tpu_custom_call.1} parent=5 // pred_check
        _
      $region10: #{tpu_custom_call.1} parent=5 // pred_check_branch
        %196 = sbr.rel (%p193) target = $region12
      $region11: #{tpu_custom_call.1} parent=5 // pred_region
        %s197 = ssub.s32 %s23, 1
      $region12: #{tpu_custom_call.1} parent=5 // pred_fallthru
        _
      %p198 = scmp.lt.s32.totalorder %s23, 2
      // Predicated region
      $region13: #{tpu_custom_call.1} parent=5 // pred_check
        %p199 = pneg %p198
      $region14: #{tpu_custom_call.1} parent=5 // pred_check_branch
        %201 = sbr.rel (%p199) target = $region16
      $region15: #{tpu_custom_call.1} parent=5 // pred_region
        // Predicated region
        $region17: #{tpu_custom_call.1} parent=15 // pred_check
          %p202 = pneg %p61
        $region18: #{tpu_custom_call.1} parent=15 // pred_check_branch
          %204 = sbr.rel (%p202) target = $region20
        $region19: #{tpu_custom_call.1} parent=15 // pred_region
          %s205 = sand.u32 %s51, 1
          %s206 = scalar_lea.sflag [#allocation3], %s205
          %s207 = sand.u32 %s51, 1
          %s208 = smul.addr %s207, 8
          %s209 = scalar_lea.vmem [#allocation2], %s208
          %s210 = sadd.s32 %s30, %s31
          %p211 = scmp.lt.s32.totalorder %s210, 0
          %s212 = scalar_select %p211, %s210, 0
          %s214 = ssub.s32 128, 128
          %215 = vsyncadd %s206, %s214
          %s216 = smul.addr %s212, 128
          %s217 = scalar_lea.hbm %s0, %s216
          %s219 = sshll.u32 %s209, 4
          %s220 = int_to_ptr.vmem [resolvable:$true] %s219
          %222 = dma.hbm_to_vmem [thread:$0]  %s217, 128, %s220, %s206
        $region20: #{tpu_custom_call.1} parent=15 // pred_fallthru
          _
        // Predicated region
        $region21: #{tpu_custom_call.1} parent=15 // pred_check
          %p223 = pneg %p93
        $region22: #{tpu_custom_call.1} parent=15 // pred_check_branch
          %225 = sbr.rel (%p223) target = $region24
        $region23: #{tpu_custom_call.1} parent=15 // pred_region
          %s226 = sand.u32 %s23, 1
          %s227 = scalar_lea.sflag [#allocation6], %s226
          %s228 = sand.u32 %s83, 1
          %s229 = smul.addr %s228, 8
          %s230 = scalar_lea.vmem [#allocation5], %s229
          %s231 = sadd.s32 %s30, %s31
          %p232 = scmp.lt.s32.totalorder %s231, 0
          %s233 = scalar_select %p232, %s231, 0
          %s235 = ssub.s32 128, 128
          %236 = vsyncadd %s227, %s235
          %s237 = smul.addr %s233, 128
          %s238 = scalar_lea.hbm %s1, %s237
          %s240 = sshll.u32 %s230, 4
          %s241 = int_to_ptr.vmem [resolvable:$true] %s240
          %243 = dma.hbm_to_vmem [thread:$0]  %s238, 128, %s241, %s227
        $region24: #{tpu_custom_call.1} parent=15 // pred_fallthru
          _
        // Predicated region
        $region25: #{tpu_custom_call.1} parent=15 // pred_check
          %p244 = pneg %p125
        $region26: #{tpu_custom_call.1} parent=15 // pred_check_branch
          %246 = sbr.rel (%p244) target = $region28
        $region27: #{tpu_custom_call.1} parent=15 // pred_region
          %s247 = sand.u32 %s23, 1
          %s248 = scalar_lea.sflag [#allocation6], %s247
          %s249 = sand.u32 %s115, 1
          %s250 = smul.addr %s249, 8
          %s251 = scalar_lea.vmem [#allocation7], %s250
          %s252 = sadd.s32 %s30, %s31
          %p253 = scmp.lt.s32.totalorder %s252, 0
          %s254 = scalar_select %p253, %s252, 0
          %s256 = ssub.s32 128, 128
          %257 = vsyncadd %s248, %s256
          %s258 = smul.addr %s254, 128
          %s259 = scalar_lea.hbm %s2, %s258
          %s261 = sshll.u32 %s251, 4
          %s262 = int_to_ptr.vmem [resolvable:$true] %s261
          %264 = dma.hbm_to_vmem [thread:$0]  %s259, 128, %s262, %s248
        $region28: #{tpu_custom_call.1} parent=15 // pred_fallthru
          _
      $region16: #{tpu_custom_call.1} parent=5 // pred_fallthru
        _
      %p265 = scmp.le.s32.totalorder 1, %s23
      %p266 = scmp.lt.s32.totalorder %s23, 3
      %p267 = pnand %p265, %p266
      %p268 = pneg %p267
      // Predicated region
      $region29: #{tpu_custom_call.1} parent=5 // pred_check
        _
      $region30: #{tpu_custom_call.1} parent=5 // pred_check_branch
        %270 = sbr.rel (%p267) target = $region32
      $region31: #{tpu_custom_call.1} parent=5 // pred_region
        %s271 = ssub.s32 %s23, 1
        %s272 = sand.u32 %s54, 1
        %s273 = scalar_lea.sflag [#allocation3], %s272
        %s274 = sand.u32 %s54, 1
        %s275 = smul.addr %s274, 8
        %s276 = scalar_lea.vmem [#allocation2], %s275
        // Predicated region
        $region33: #{tpu_custom_call.1} parent=31 // pred_check
          %p277 = pneg %p67
        $region34: #{tpu_custom_call.1} parent=31 // pred_check_branch
          %279 = sbr.rel (%p277) target = $region36
        $region35: #{tpu_custom_call.1} parent=31 // pred_region
          %280 = dma.done %s273, 128
        $region36: #{tpu_custom_call.1} parent=31 // pred_fallthru
          _
        %s281 = sand.u32 %s28, 1
        %s282 = scalar_lea.sflag [#allocation6], %s281
        %s283 = sand.u32 %s86, 1
        %s284 = smul.addr %s283, 8
        %s285 = scalar_lea.vmem [#allocation5], %s284
        // Predicated region
        $region37: #{tpu_custom_call.1} parent=31 // pred_check
          %p286 = pneg %p99
        $region38: #{tpu_custom_call.1} parent=31 // pred_check_branch
          %288 = sbr.rel (%p286) target = $region40
        $region39: #{tpu_custom_call.1} parent=31 // pred_region
          %289 = dma.done %s282, 128
        $region40: #{tpu_custom_call.1} parent=31 // pred_fallthru
          _
        %s290 = sand.u32 %s28, 1
        %s291 = scalar_lea.sflag [#allocation6], %s290
        %s292 = sand.u32 %s118, 1
        %s293 = smul.addr %s292, 8
        %s294 = scalar_lea.vmem [#allocation7], %s293
        // Predicated region
        $region41: #{tpu_custom_call.1} parent=31 // pred_check
          %p295 = pneg %p131
        $region42: #{tpu_custom_call.1} parent=31 // pred_check_branch
          %297 = sbr.rel (%p295) target = $region44
        $region43: #{tpu_custom_call.1} parent=31 // pred_region
          %298 = dma.done %s291, 128
        $region44: #{tpu_custom_call.1} parent=31 // pred_fallthru
          _
        %s299 = sand.u32 %s54, 1
        %s300 = scalar_lea.sflag [#allocation3], %s299
        %s301 = sand.u32 %s54, 1
        %s302 = smul.addr %s301, 8
        %s303 = scalar_lea.vmem [#allocation2], %s302
        %p304 = pneg %p67
        %p305 = pneg %p64
        %s306 = sand.u32 %s28, 1
        %s307 = scalar_lea.sflag [#allocation6], %s306
        %s308 = sand.u32 %s86, 1
        %s309 = smul.addr %s308, 8
        %s310 = scalar_lea.vmem [#allocation5], %s309
        %p311 = pneg %p99
        %p312 = pneg %p96
        %s313 = sand.u32 %s28, 1
        %s314 = scalar_lea.sflag [#allocation6], %s313
        %s315 = sand.u32 %s118, 1
        %s316 = smul.addr %s315, 8
        %s317 = scalar_lea.vmem [#allocation7], %s316
        %p318 = pneg %p131
        %p319 = pneg %p128
        %p320 = pneg %p157
        %p321 = pneg %p154
        %s322 = sand.u32 %s144, 1
        %s323 = scalar_lea.sflag [#allocation4], %s322
        %s324 = sand.u32 %s144, 1
        %s325 = smul.addr %s324, 8
        %s326 = scalar_lea.vmem [#allocation8], %s325
        %p327 = pneg %p183
        %p328 = pneg %p180
        %s329 = sand.u32 %s170, 1
        %s330 = scalar_lea.sflag [#allocation10], %s329
        %s331 = sand.u32 %s170, 1
        %s332 = smul.addr %s331, 8
        %s333 = scalar_lea.vmem [#allocation9], %s332
        %s334 = sadd.s32 %s32, %s33
        %p335 = scmp.lt.s32.totalorder %s334, 0
        %s336 = scalar_select %p335, %s334, 0
        %s337 = sadd.s32 %s32, %s33
        %p338 = scmp.lt.s32.totalorder %s337, 0
        %s339 = scalar_select %p338, %s337, 0
        %s340 = sadd.s32 %s32, %s33
        %p341 = scmp.lt.s32.totalorder %s340, 0
        %s342 = scalar_select %p341, %s340, 0
        %p343 = scmp.eq.s32.totalorder %s33, 0
        // Predicated region
        $region45: #{tpu_custom_call.1} parent=31 // pred_check
          %p344 = pneg %p343
        $region46: #{tpu_custom_call.1} parent=31 // pred_check_branch
          %346 = sbr.rel (%p344) target = $region48
        $region47: #{tpu_custom_call.1} parent=31 // pred_region
          %347 = vst [vmem:[%s326] sm:$0xff] 0.0
          %348 = vst [vmem:[%s333] sm:$0xff] 0.0
        $region48: #{tpu_custom_call.1} parent=31 // pred_fallthru
          _
        %s349 = sadd.s32 %s32, %s33
        %p350 = scmp.lt.s32.totalorder %s349, 1
        // Predicated region
        $region49: #{tpu_custom_call.1} parent=31 // pred_check
          %p351 = pneg %p350
        $region50: #{tpu_custom_call.1} parent=31 // pred_check_branch
          %353 = sbr.rel (%p351) target = $region52
        $region51: #{tpu_custom_call.1} parent=31 // pred_region
          %v354 = vld [vmem:[%s276] sm:$0xff]
          %v355 = vld [vmem:[%s285] sm:$0xff]
          %v356 = vld [vmem:[%s294] sm:$0xff]
          %v357 = vsub.f32 %v354, %v355
          %v358 = vmul.f32 %v357, %v357
          %v359 = vmul.f32 %v358, %v356
          %v360 = vadd.f32 %v359, 0.0
          %v361 = vadd.f32 %v360, 0.0
          %v362 = vadd.f32 %v356, 0.0
          %v363 = vadd.f32 %v362, 0.0
          %v364 = vld [vmem:[%s326] sm:$0xff]
          %v365 = vadd.f32 %v364, %v361
          %366 = vst [vmem:[%s326] sm:$0xff] %v365
          %v367 = vld [vmem:[%s333] sm:$0xff]
          %v368 = vadd.f32 %v367, %v363
          %369 = vst [vmem:[%s333] sm:$0xff] %v368
        $region52: #{tpu_custom_call.1} parent=31 // pred_fallthru
          _
        %s370 = sand.u32 %s144, 1
        %s371 = scalar_lea.sflag [#allocation4], %s370
        %s372 = sand.u32 %s144, 1
        %s373 = smul.addr %s372, 8
        %s374 = scalar_lea.vmem [#allocation8], %s373
        %s375 = sand.u32 %s170, 1
        %s376 = scalar_lea.sflag [#allocation10], %s375
        %s377 = sand.u32 %s170, 1
        %s378 = smul.addr %s377, 8
        %s379 = scalar_lea.vmem [#allocation9], %s378
        // Predicated region
        $region53: #{tpu_custom_call.1} parent=31 // pred_check
          %p380 = pneg %p154
        $region54: #{tpu_custom_call.1} parent=31 // pred_check_branch
          %382 = sbr.rel (%p380) target = $region56
        $region55: #{tpu_custom_call.1} parent=31 // pred_region
          %s384 = ssub.s32 128, 128
          %385 = vsyncadd %s371, %s384
          %s386 = smul.addr %s32, 128
          %s387 = scalar_lea.hbm %s3, %s386
          %s389 = sshll.u32 %s374, 4
          %s390 = int_to_ptr.vmem [resolvable:$true] %s389
          %392 = dma.vmem_to_hbm [thread:$0]  %s390, 128, %s387, %s371
        $region56: #{tpu_custom_call.1} parent=31 // pred_fallthru
          _
        // Predicated region
        $region57: #{tpu_custom_call.1} parent=31 // pred_check
          %p393 = pneg %p180
        $region58: #{tpu_custom_call.1} parent=31 // pred_check_branch
          %395 = sbr.rel (%p393) target = $region60
        $region59: #{tpu_custom_call.1} parent=31 // pred_region
          %s397 = ssub.s32 128, 128
          %398 = vsyncadd %s376, %s397
          %s399 = smul.addr %s32, 128
          %s400 = scalar_lea.hbm %s4, %s399
          %s402 = sshll.u32 %s379, 4
          %s403 = int_to_ptr.vmem [resolvable:$true] %s402
          %405 = dma.vmem_to_hbm [thread:$0]  %s403, 128, %s400, %s376
        $region60: #{tpu_custom_call.1} parent=31 // pred_fallthru
          _
      $region32: #{tpu_custom_call.1} parent=5 // pred_fallthru
        _
      %p406 = scmp.le.s32.totalorder 2, %s23
      // Predicated region
      $region61: #{tpu_custom_call.1} parent=5 // pred_check
        %p407 = pneg %p406
      $region62: #{tpu_custom_call.1} parent=5 // pred_check_branch
        %409 = sbr.rel (%p407) target = $region64
      $region63: #{tpu_custom_call.1} parent=5 // pred_region
        %s410 = ssub.s32 %s23, 2
        // Predicated region
        $region65: #{tpu_custom_call.1} parent=63 // pred_check
          %p411 = pneg %p160
        $region66: #{tpu_custom_call.1} parent=63 // pred_check_branch
          %413 = sbr.rel (%p411) target = $region68
        $region67: #{tpu_custom_call.1} parent=63 // pred_region
          %s414 = sand.u32 %s145, 1
          %s415 = scalar_lea.sflag [#allocation4], %s414
          %s416 = sand.u32 %s145, 1
          %s417 = smul.addr %s416, 8
          %s418 = scalar_lea.vmem [#allocation8], %s417
          %419 = dma.done %s415, 128
        $region68: #{tpu_custom_call.1} parent=63 // pred_fallthru
          _
        // Predicated region
        $region69: #{tpu_custom_call.1} parent=63 // pred_check
          %p420 = pneg %p186
        $region70: #{tpu_custom_call.1} parent=63 // pred_check_branch
          %422 = sbr.rel (%p420) target = $region72
        $region71: #{tpu_custom_call.1} parent=63 // pred_region
          %s423 = sand.u32 %s171, 1
          %s424 = scalar_lea.sflag [#allocation10], %s423
          %s425 = sand.u32 %s171, 1
          %s426 = smul.addr %s425, 8
          %s427 = scalar_lea.vmem [#allocation9], %s426
          %428 = dma.done %s424, 128
        $region72: #{tpu_custom_call.1} parent=63 // pred_fallthru
          _
      $region64: #{tpu_custom_call.1} parent=5 // pred_fallthru
        _
    $region6: #{tpu_custom_call.1} parent=1 // loop_footer
      %s27 = sadd.s32 1, %s23
    $region7: #{tpu_custom_call.1} parent=1 // loop_footer_branch
      %22 = sbr.rel target = $region3
    $region8: #{tpu_custom_call.1} parent=1 // loop_exit
      _
    %429 = vsyncpa [#allocation3], 1
    %s430 = scalar_lea.sflag [#allocation3], 1
    %431 = vsyncpa %s430, 1
    %432 = vsyncpa [#allocation6], 1
    %s433 = scalar_lea.sflag [#allocation6], 1
    %434 = vsyncpa %s433, 1
    %435 = vsyncpa [#allocation4], 1
    %s436 = scalar_lea.sflag [#allocation4], 1
    %437 = vsyncpa %s436, 1
    %438 = vsyncpa [#allocation10], 1
    %s439 = scalar_lea.sflag [#allocation10], 1
    %440 = vsyncpa %s439, 1

</llo_original>
